<compile_context>
chip_gen: v5e
topology: v5e:2x2
jax: 0.10.0
libtpu: 0.0.40
codegen_flags: <defaults>
</compile_context>

<pallas_src>
import functools

import jax
import jax.numpy as jnp
from jax.experimental import pallas as pl
from jax.experimental.pallas import tpu as pltpu

LANE = 128


def _pad_to(n, m):
    return ((n + m - 1) // m) * m


def _carry_dtype():
    # bf16 activation carry on chips with a native bf16 VALU (v6e/v7x);
    # keep the elementwise carry in f32 on v5-generation chips.
    try:
        kind = jax.devices()[0].device_kind.lower()
    except Exception:
        kind = ""
    return jnp.float32 if "v5" in kind else jnp.bfloat16


CARRY_DTYPE = _carry_dtype()


def _vmem_limit_bytes(footprint_bytes):
    # Leave headroom below physical VMEM (v7x has only 64 MiB per TensorCore).
    try:
        cap = int(pltpu.get_tpu_info().vmem_capacity_bytes)
    except Exception:
        cap = 64 << 20
    return int(max(16 << 20,
                   min(cap - (16 << 20),
                       max(4 * footprint_bytes, 32 << 20))))


# -----------------------------------------------------------------------------
# Fused kernel.  Grid = (num_layers,), one conv layer per grid step; the head
# (lin1 -> lin2 -> log_softmax) runs under pl.when on the final step.
# -----------------------------------------------------------------------------
def fused_sparse_cin_kernel(num_layers, num_classes, carry_dtype,
                            adj_ref, x0_ref, convw_ref, convb_ref,
                            w1_ref, b1_ref, w2_ref, b2_ref,
                            o_ref, x_scr):
    l = pl.program_id(0)

    @pl.when(l == 0)
    def _():
        x_scr[...] = x0_ref[...]

    # (A + I) @ x  -- self-term folded into adj on the host, so no per-layer
    # (x + agg) VPU add and only a single bf16 cast of x feeds the MXU.
    x_bf = x_scr[...].astype(jnp.bfloat16)
    agg = jnp.dot(adj_ref[...], x_bf, preferred_element_type=jnp.float32)

    # Per-layer conv weight/bias, streamed via the layer grid axis.
    y = jnp.dot(agg.astype(jnp.bfloat16), convw_ref[0],
                preferred_element_type=jnp.float32) + convb_ref[0]
    x_new = jnp.maximum(y, 0.0)                      # ReLU (f32 accumulate)
    x_scr[...] = x_new.astype(carry_dtype)           # bf16 carry on v6e/v7x

    @pl.when(l == num_layers - 1)
    def _():
        # Head: lin1 -> dropout (identity, inference) -> lin2 -> log_softmax.
        h1 = jnp.dot(x_new.astype(jnp.bfloat16), w1_ref[...],
                     preferred_element_type=jnp.float32) + b1_ref[...]
        logits = jnp.dot(h1.astype(jnp.bfloat16), w2_ref[...],
                         preferred_element_type=jnp.float32) + b2_ref[...]

        # Mask lane-padding columns so the reduction only sees real classes.
        col = jax.lax.broadcasted_iota(jnp.int32, logits.shape, 1)
        logits = jnp.where(col < num_classes, logits, jnp.float32(-1e30))

        m = jnp.max(logits, axis=1, keepdims=True)
        lse = jnp.log(jnp.sum(jnp.exp(logits - m), axis=1, keepdims=True)) + m
        o_ref[...] = logits - lse


# -----------------------------------------------------------------------------
# One-time parameter prep (padding / stacking / bf16 casts hoisted out of the
# per-call path).
# -----------------------------------------------------------------------------
def prepare_params(params, num_classes, hidden_dim):
    num_layers = len(params["convs"])
    h_pad = _pad_to(hidden_dim, LANE)
    c_pad = _pad_to(num_classes, LANE)

    convw = jnp.zeros((num_layers, h_pad, h_pad), jnp.float32)
    convb = jnp.zeros((num_layers, 1, h_pad), jnp.float32)
    for i, (w, b) in enumerate(params["convs"]):
        convw = convw.at[i, :w.shape[0], :w.shape[1]].set(w)
        convb = convb.at[i, :, :b.shape[1]].set(b)

    w1 = (jnp.zeros((h_pad, h_pad), jnp.float32)
          .at[:hidden_dim, :hidden_dim].set(params["w1"]).astype(jnp.bfloat16))
    b1 = jnp.zeros((1, h_pad), jnp.float32).at[:, :hidden_dim].set(params["b1"])
    w2 = (jnp.zeros((h_pad, c_pad), jnp.float32)
          .at[:hidden_dim, :num_classes].set(params["w2"]).astype(jnp.bfloat16))
    b2 = jnp.zeros((1, c_pad), jnp.float32).at[:, :num_classes].set(params["b2"])

    return {"convw": convw.astype(jnp.bfloat16), "convb": convb,
            "w1": w1, "b1": b1, "w2": w2, "b2": b2}


# -----------------------------------------------------------------------------
# Jitted forward: adjacency scatter (+ self-loop fold) + one fused pallas_call.
# -----------------------------------------------------------------------------
@functools.partial(jax.jit,
                   static_argnames=("num_nodes", "num_features", "num_classes"))
def sparse_cin_forward(prepped, x, edge_index, *, num_nodes, num_features,
                       num_classes):
    convw = prepped["convw"]
    num_layers, h_pad, _ = convw.shape
    c_pad = prepped["w2"].shape[1]
    n_pad = _pad_to(max(num_nodes, 8), LANE)
    carry_bytes = jnp.dtype(CARRY_DTYPE).itemsize

    # Dense padded adjacency with the self-term folded in (A <- A + I).
    # bf16 is exact for small integer edge-multiplicity counts (< 256).
    # TODO(synk): tiled / CSR scalar-prefetch aggregation for large N.
    src, dst = edge_index[0], edge_index[1]
    adj = jnp.zeros((n_pad, n_pad), jnp.float32).at[dst, src].add(1.0)
    diag = jnp.arange(num_nodes)
    adj = adj.at[diag, diag].add(1.0)
    adj = adj.astype(jnp.bfloat16)

    x_p = (jnp.zeros((n_pad, h_pad), jnp.float32)
           .at[:num_nodes, :num_features].set(x).astype(CARRY_DTYPE))

    kernel = functools.partial(fused_sparse_cin_kernel, num_layers,
                               num_classes, CARRY_DTYPE)

    flops = (num_layers * (2 * n_pad * n_pad * h_pad + 2 * n_pad * h_pad * h_pad)
             + 2 * n_pad * h_pad * h_pad + 2 * n_pad * h_pad * c_pad)
    bytes_accessed = (adj.size * 2 + x_p.size * carry_bytes
                      + convw.size * 2 + prepped["convb"].size * 4
                      + prepped["w1"].size * 2 + prepped["b1"].size * 4
                      + prepped["w2"].size * 2 + prepped["b2"].size * 4
                      + n_pad * c_pad * 4)

    # VMEM footprint: resident adj/x0/head weights/output/carry + a
    # double-buffered streamed conv layer.
    footprint = (adj.size * 2 + x_p.size * carry_bytes
                 + 2 * h_pad * h_pad * 2 + 2 * h_pad * 4
                 + h_pad * h_pad * 2 + h_pad * 4
                 + h_pad * c_pad * 2 + c_pad * 4
                 + n_pad * c_pad * 4
                 + n_pad * h_pad * carry_bytes)

    grid_spec = pltpu.PrefetchScalarGridSpec(
        num_scalar_prefetch=0,
        grid=(num_layers,),
        in_specs=[
            pl.BlockSpec((n_pad, n_pad), lambda l: (0, 0)),        # adj (resident)
            pl.BlockSpec((n_pad, h_pad), lambda l: (0, 0)),        # x0  (resident)
            pl.BlockSpec((1, h_pad, h_pad), lambda l: (l, 0, 0)),  # W_l (streamed)
            pl.BlockSpec((1, 1, h_pad), lambda l: (l, 0, 0)),      # b_l (streamed)
            pl.BlockSpec((h_pad, h_pad), lambda l: (0, 0)),        # lin1 W
            pl.BlockSpec((1, h_pad), lambda l: (0, 0)),            # lin1 b
            pl.BlockSpec((h_pad, c_pad), lambda l: (0, 0)),        # lin2 W
            pl.BlockSpec((1, c_pad), lambda l: (0, 0)),            # lin2 b
        ],
        out_specs=pl.BlockSpec((n_pad, c_pad), lambda l: (0, 0)),
        scratch_shapes=[pltpu.VMEM((n_pad, h_pad), CARRY_DTYPE)],  # x carry
    )

    out_pad = pl.pallas_call(
        kernel,
        out_shape=jax.ShapeDtypeStruct((n_pad, c_pad), jnp.float32),
        grid_spec=grid_spec,
        compiler_params=pltpu.CompilerParams(
            dimension_semantics=("arbitrary",),
            vmem_limit_bytes=_vmem_limit_bytes(footprint)),
        cost_estimate=pl.CostEstimate(flops=flops,
                                      transcendentals=n_pad * c_pad,
                                      bytes_accessed=bytes_accessed),
    )(adj, x_p, convw, prepped["convb"], prepped["w1"], prepped["b1"],
      prepped["w2"], prepped["b2"])

    return out_pad[:num_nodes, :num_classes]


# -----------------------------------------------------------------------------
# Parameter init (matches the PyTorch module's layer shapes) + pure-JAX ref
# -----------------------------------------------------------------------------
def init_params(key, num_features, num_classes, hidden_dim, num_layers):
    params = {"convs": []}
    keys = jax.random.split(key, num_layers + 2)
    for i in range(num_layers):
        in_dim = num_features if i == 0 else hidden_dim
        scale = 1.0 / jnp.sqrt(in_dim)
        w = jax.random.uniform(keys[i], (in_dim, hidden_dim), jnp.float32,
                               minval=-scale, maxval=scale)
        b = jnp.zeros((1, hidden_dim), jnp.float32)
        params["convs"].append((w, b))

    s1 = 1.0 / jnp.sqrt(hidden_dim)
    params["w1"] = jax.random.uniform(keys[num_layers], (hidden_dim, hidden_dim),
                                      jnp.float32, minval=-s1, maxval=s1)
    params["b1"] = jnp.zeros((1, hidden_dim), jnp.float32)
    params["w2"] = jax.random.uniform(keys[num_layers + 1], (hidden_dim, num_classes),
                                      jnp.float32, minval=-s1, maxval=s1)
    params["b2"] = jnp.zeros((1, num_classes), jnp.float32)
    return params


def reference_forward(params, x, edge_index, num_nodes):
    src, dst = edge_index[0], edge_index[1]
    adj = jnp.zeros((num_nodes, num_nodes), jnp.float32).at[dst, src].add(1.0)
    h = x
    for (w, b) in params["convs"]:
        h = jax.nn.relu((h + adj @ h) @ w + b)
    h = h @ params["w1"] + params["b1"]
    logits = h @ params["w2"] + params["b2"]
    return jax.nn.log_softmax(logits, axis=1)


if __name__ == "__main__":
    # Small synthetic graph: 16 nodes, 8 input features, 32 hidden, 4 classes.
    NUM_NODES = 16
    NUM_FEATURES = 8
    HIDDEN_DIM = 32
    NUM_CLASSES = 4
    NUM_LAYERS = 4
    NUM_EDGES = 40

    key = jax.random.PRNGKey(0)
    kx, ke, kp = jax.random.split(key, 3)

    x = jax.random.normal(kx, (NUM_NODES, NUM_FEATURES), jnp.float32)
    edge_index = jax.random.randint(ke, (2, NUM_EDGES), 0, NUM_NODES, jnp.int32)

    params = init_params(kp, NUM_FEATURES, NUM_CLASSES, HIDDEN_DIM, NUM_LAYERS)
    prepped = prepare_params(params, NUM_CLASSES, HIDDEN_DIM)

    out = sparse_cin_forward(prepped, x, edge_index,
                             num_nodes=NUM_NODES, num_features=NUM_FEATURES,
                             num_classes=NUM_CLASSES)
    out = jax.block_until_ready(out)

    assert out.shape == (NUM_NODES, NUM_CLASSES)
    # log_softmax rows should exponentiate-and-sum to ~1
    assert bool(jnp.allclose(jnp.sum(jnp.exp(out), axis=1), 1.0, atol=1e-3))
    # loose check vs an f32 pure-JAX reference (kernel matmuls run in bf16)
    ref = reference_forward(params, x, edge_index, NUM_NODES)
    assert bool(jnp.allclose(out, ref, atol=2e-1, rtol=1e-1))
    print("KERNEL_OK")
</pallas_src>

<mosaic_0001>
module attributes {stable_mosaic.version = 11 : i64} {
  func.func @fused_sparse_cin_kernel(%arg0: i32, %arg1: memref<128x128xbf16, #tpu.memory_space<vmem>>, %arg2: memref<128x128xbf16, #tpu.memory_space<vmem>>, %arg3: memref<1x128x128xbf16, #tpu.memory_space<vmem>>, %arg4: memref<1x1x128xf32, #tpu.memory_space<vmem>>, %arg5: memref<128x128xbf16, #tpu.memory_space<vmem>>, %arg6: memref<1x128xf32, #tpu.memory_space<vmem>>, %arg7: memref<128x128xbf16, #tpu.memory_space<vmem>>, %arg8: memref<1x128xf32, #tpu.memory_space<vmem>>, %arg9: memref<128x128xf32, #tpu.memory_space<vmem>>, %arg10: memref<128x128xbf16, #tpu.memory_space<vmem>>) attributes {dimension_semantics = [#tpu.dimension_semantics<arbitrary>], iteration_bounds = array<i64: 4>, scalar_prefetch = 0 : i64, scratch_operands = 1 : i64, tpu.core_type = #tpu.core_type<tc>, window_params = [{pipeline_mode = #tpu.pipeline_mode<synchronous>, transform_indices = @transform_0, window_bounds = array<i64: 128, 128>}, {pipeline_mode = #tpu.pipeline_mode<synchronous>, transform_indices = @transform_1, window_bounds = array<i64: 128, 128>}, {transform_indices = @transform_2, window_bounds = array<i64: 1, 128, 128>}, {transform_indices = @transform_3, window_bounds = array<i64: 1, 1, 128>}, {pipeline_mode = #tpu.pipeline_mode<synchronous>, transform_indices = @transform_4, window_bounds = array<i64: 128, 128>}, {pipeline_mode = #tpu.pipeline_mode<synchronous>, transform_indices = @transform_5, window_bounds = array<i64: 1, 128>}, {pipeline_mode = #tpu.pipeline_mode<synchronous>, transform_indices = @transform_6, window_bounds = array<i64: 128, 128>}, {pipeline_mode = #tpu.pipeline_mode<synchronous>, transform_indices = @transform_7, window_bounds = array<i64: 1, 128>}, {pipeline_mode = #tpu.pipeline_mode<synchronous>, transform_indices = @transform_8, window_bounds = array<i64: 128, 128>}]} {
    %c0_i32 = arith.constant 0 : i32
    %0 = arith.cmpi eq, %arg0, %c0_i32 : i32
    %1 = arith.extui %0 : i1 to i32
    %c0_i32_0 = arith.constant 0 : i32
    %2 = arith.cmpi ne, %1, %c0_i32_0 : i32
    scf.if %2 {
      %c0_15 = arith.constant 0 : index
      %c0_16 = arith.constant 0 : index
      %21 = vector.load %arg2[%c0_15, %c0_16] : memref<128x128xbf16, #tpu.memory_space<vmem>>, vector<128x128xbf16>
      %c0_17 = arith.constant 0 : index
      %c0_18 = arith.constant 0 : index
      %22 = vector.load %arg10[%c0_17, %c0_18] : memref<128x128xbf16, #tpu.memory_space<vmem>>, vector<128x128xbf16>
      tpu.vector_store %arg10[%c0_17, %c0_18], %21 {strides = array<i32>} : memref<128x128xbf16, #tpu.memory_space<vmem>>, vector<128x128xbf16>,
    } else {
    }
    %c0 = arith.constant 0 : index
    %c0_1 = arith.constant 0 : index
    %3 = vector.load %arg10[%c0, %c0_1] : memref<128x128xbf16, #tpu.memory_space<vmem>>, vector<128x128xbf16>
    %c0_2 = arith.constant 0 : index
    %c0_3 = arith.constant 0 : index
    %4 = vector.load %arg1[%c0_2, %c0_3] : memref<128x128xbf16, #tpu.memory_space<vmem>>, vector<128x128xbf16>
    %cst = arith.constant dense<0.000000e+00> : vector<128x128xf32>
    %5 = tpu.matmul %4, %3, %cst {dimension_numbers = #tpu.dot_dimension_numbers<[1], [0], [0], [1], [0, 0, 1, 1], [], []>} : vector<128x128xbf16>, vector<128x128xbf16>, vector<128x128xf32> -> vector<128x128xf32>
    %6 = arith.truncf %5 : vector<128x128xf32> to vector<128x128xbf16>
    %c0_4 = arith.constant 0 : index
    %c0_5 = arith.constant 0 : index
    %c0_6 = arith.constant 0 : index
    %7 = vector.load %arg3[%c0_4, %c0_5, %c0_6] : memref<1x128x128xbf16, #tpu.memory_space<vmem>>, vector<1x128x128xbf16>
    %8 = vector.shape_cast %7 : vector<1x128x128xbf16> to vector<128x128xbf16>
    %cst_7 = arith.constant dense<0.000000e+00> : vector<128x128xf32>
    %9 = tpu.matmul %6, %8, %cst_7 {dimension_numbers = #tpu.dot_dimension_numbers<[1], [0], [0], [1], [0, 0, 1, 1], [], []>} : vector<128x128xbf16>, vector<128x128xbf16>, vector<128x128xf32> -> vector<128x128xf32>
    %c0_8 = arith.constant 0 : index
    %c0_9 = arith.constant 0 : index
    %c0_10 = arith.constant 0 : index
    %10 = vector.load %arg4[%c0_8, %c0_9, %c0_10] : memref<1x1x128xf32, #tpu.memory_space<vmem>>, vector<1x1x128xf32>
    %11 = vector.shape_cast %10 : vector<1x1x128xf32> to vector<1x128xf32>
    %12 = vector.broadcast %11 : vector<1x128xf32> to vector<128x128xf32>
    %13 = arith.addf %9, %12 : vector<128x128xf32>
    %cst_11 = arith.constant 0.000000e+00 : f32
    %14 = vector.broadcast %cst_11 : f32 to vector<128x128xf32>
    %15 = arith.maximumf %13, %14 : vector<128x128xf32>
    %16 = arith.truncf %15 : vector<128x128xf32> to vector<128x128xbf16>
    %c0_12 = arith.constant 0 : index
    %c0_13 = arith.constant 0 : index
    %17 = vector.load %arg10[%c0_12, %c0_13] : memref<128x128xbf16, #tpu.memory_space<vmem>>, vector<128x128xbf16>
    tpu.vector_store %arg10[%c0_12, %c0_13], %16 {strides = array<i32>} : memref<128x128xbf16, #tpu.memory_space<vmem>>, vector<128x128xbf16>,
    %c3_i32 = arith.constant 3 : i32
    %18 = arith.cmpi eq, %arg0, %c3_i32 : i32
    %19 = arith.extui %18 : i1 to i32
    %c0_i32_14 = arith.constant 0 : i32
    %20 = arith.cmpi ne, %19, %c0_i32_14 : i32
    scf.if %20 {
      %21 = arith.truncf %15 : vector<128x128xf32> to vector<128x128xbf16>
      %c0_15 = arith.constant 0 : index
      %c0_16 = arith.constant 0 : index
      %22 = vector.load %arg5[%c0_15, %c0_16] : memref<128x128xbf16, #tpu.memory_space<vmem>>, vector<128x128xbf16>
      %cst_17 = arith.constant dense<0.000000e+00> : vector<128x128xf32>
      %23 = tpu.matmul %21, %22, %cst_17 {dimension_numbers = #tpu.dot_dimension_numbers<[1], [0], [0], [1], [0, 0, 1, 1], [], []>} : vector<128x128xbf16>, vector<128x128xbf16>, vector<128x128xf32> -> vector<128x128xf32>
      %c0_18 = arith.constant 0 : index
      %c0_19 = arith.constant 0 : index
      %24 = vector.load %arg6[%c0_18, %c0_19] : memref<1x128xf32, #tpu.memory_space<vmem>>, vector<1x128xf32>
      %25 = vector.broadcast %24 : vector<1x128xf32> to vector<128x128xf32>
      %26 = arith.addf %23, %25 : vector<128x128xf32>
      %27 = arith.truncf %26 : vector<128x128xf32> to vector<128x128xbf16>
      %c0_20 = arith.constant 0 : index
      %c0_21 = arith.constant 0 : index
      %28 = vector.load %arg7[%c0_20, %c0_21] : memref<128x128xbf16, #tpu.memory_space<vmem>>, vector<128x128xbf16>
      %cst_22 = arith.constant dense<0.000000e+00> : vector<128x128xf32>
      %29 = tpu.matmul %27, %28, %cst_22 {dimension_numbers = #tpu.dot_dimension_numbers<[1], [0], [0], [1], [0, 0, 1, 1], [], []>} : vector<128x128xbf16>, vector<128x128xbf16>, vector<128x128xf32> -> vector<128x128xf32>
      %c0_23 = arith.constant 0 : index
      %c0_24 = arith.constant 0 : index
      %30 = vector.load %arg8[%c0_23, %c0_24] : memref<1x128xf32, #tpu.memory_space<vmem>>, vector<1x128xf32>
      %31 = vector.broadcast %30 : vector<1x128xf32> to vector<128x128xf32>
      %32 = arith.addf %29, %31 : vector<128x128xf32>
      %33 = tpu.iota {dimensions = array<i32: 1>} : vector<128x128xi32>
      %c4_i32 = arith.constant 4 : i32
      %34 = vector.broadcast %c4_i32 : i32 to vector<128x128xi32>
      %35 = arith.cmpi slt, %33, %34 : vector<128x128xi32>
      %cst_25 = arith.constant -1.000000e+30 : f32
      %36 = vector.broadcast %cst_25 : f32 to vector<128x128xf32>
      %37 = arith.select %35, %32, %36 : vector<128x128xi1>, vector<128x128xf32>
      %cst_26 = arith.constant dense<0xFF800000> : vector<128xf32>
      %38 = vector.multi_reduction <maximumf>, %37, %cst_26 [1] : vector<128x128xf32> to vector<128xf32>
      %39 = vector.shape_cast %38 : vector<128xf32> to vector<128x1xf32>
      %40 = vector.broadcast %39 : vector<128x1xf32> to vector<128x128xf32>
      %41 = arith.subf %37, %40 : vector<128x128xf32>
      %42 = math.exp %41 : vector<128x128xf32>
      %cst_27 = arith.constant dense<0.000000e+00> : vector<128xf32>
      %43 = vector.multi_reduction <add>, %42, %cst_27 [1] : vector<128x128xf32> to vector<128xf32>
      %44 = vector.shape_cast %43 : vector<128xf32> to vector<128x1xf32>
      %45 = math.log %44 : vector<128x1xf32>
      %46 = arith.addf %45, %39 : vector<128x1xf32>
      %47 = vector.broadcast %46 : vector<128x1xf32> to vector<128x128xf32>
      %48 = arith.subf %37, %47 : vector<128x128xf32>
      %c0_28 = arith.constant 0 : index
      %c0_29 = arith.constant 0 : index
      %49 = vector.load %arg9[%c0_28, %c0_29] : memref<128x128xf32, #tpu.memory_space<vmem>>, vector<128x128xf32>
      tpu.vector_store %arg9[%c0_28, %c0_29], %48 {strides = array<i32>} : memref<128x128xf32, #tpu.memory_space<vmem>>, vector<128x128xf32>,
    } else {
    }
    return
  }
  func.func @transform_0(%arg0: i32) -> (i32, i32) {
    %c0_i32 = arith.constant 0 : i32
    %c0_i32_0 = arith.constant 0 : i32
    %c0_i32_1 = arith.constant 0 : i32
    return %c0_i32, %c0_i32_0 : i32, i32
  }
  func.func @transform_1(%arg0: i32) -> (i32, i32) {
    %c0_i32 = arith.constant 0 : i32
    %c0_i32_0 = arith.constant 0 : i32
    %c0_i32_1 = arith.constant 0 : i32
    return %c0_i32, %c0_i32_0 : i32, i32
  }
  func.func @transform_2(%arg0: i32) -> (i32, i32, i32) {
    %c0_i32 = arith.constant 0 : i32
    %c0_i32_0 = arith.constant 0 : i32
    %c0_i32_1 = arith.constant 0 : i32
    return %arg0, %c0_i32, %c0_i32_0 : i32, i32, i32
  }
  func.func @transform_3(%arg0: i32) -> (i32, i32, i32) {
    %c0_i32 = arith.constant 0 : i32
    %c0_i32_0 = arith.constant 0 : i32
    %c0_i32_1 = arith.constant 0 : i32
    return %arg0, %c0_i32, %c0_i32_0 : i32, i32, i32
  }
  func.func @transform_4(%arg0: i32) -> (i32, i32) {
    %c0_i32 = arith.constant 0 : i32
    %c0_i32_0 = arith.constant 0 : i32
    %c0_i32_1 = arith.constant 0 : i32
    return %c0_i32, %c0_i32_0 : i32, i32
  }
  func.func @transform_5(%arg0: i32) -> (i32, i32) {
    %c0_i32 = arith.constant 0 : i32
    %c0_i32_0 = arith.constant 0 : i32
    %c0_i32_1 = arith.constant 0 : i32
    return %c0_i32, %c0_i32_0 : i32, i32
  }
  func.func @transform_6(%arg0: i32) -> (i32, i32) {
    %c0_i32 = arith.constant 0 : i32
    %c0_i32_0 = arith.constant 0 : i32
    %c0_i32_1 = arith.constant 0 : i32
    return %c0_i32, %c0_i32_0 : i32, i32
  }
  func.func @transform_7(%arg0: i32) -> (i32, i32) {
    %c0_i32 = arith.constant 0 : i32
    %c0_i32_0 = arith.constant 0 : i32
    %c0_i32_1 = arith.constant 0 : i32
    return %c0_i32, %c0_i32_0 : i32, i32
  }
  func.func @transform_8(%arg0: i32) -> (i32, i32) {
    %c0_i32 = arith.constant 0 : i32
    %c0_i32_0 = arith.constant 0 : i32
    %c0_i32_1 = arith.constant 0 : i32
    return %c0_i32, %c0_i32_0 : i32, i32
  }
}

</mosaic_0001>

<llo_original>
// kernel: sparse_cin_forward.1
$region0: #{sparse_cin_forward.1}
  #allocation0 [shape = 'u32[]', space=smem, size = 0x4, offset = 0x4, fixed_abs, tag = 'smem constant byte address 0x4 - core index']
  #allocation1 [shape = 'u32[72,128]{1,0:T(1,128)}', space=vmem, size = 0x9000, scoped, tag = 'internal scratch']
  #allocation2 [shape = 'bf16[128,128]{1,0:T(8,128)(2,1)}', space=vmem, size = 0x8000, scoped, tag = 'scratch operand']
  %s0 = inlined_call_operand.vmem [shape: bf16[128,128], index: 0, kind: input, shape index: {}]
  %s1 = inlined_call_operand.vmem [shape: bf16[128,128], index: 1, kind: input, shape index: {}]
  %s2 = inlined_call_operand.vmem [shape: bf16[4,128,128], index: 2, kind: input, shape index: {}]
  %s3 = inlined_call_operand.vmem [shape: f32[4,1,128], index: 3, kind: input, shape index: {}]
  %s4 = inlined_call_operand.vmem [shape: bf16[128,128], index: 4, kind: input, shape index: {}]
  %s5 = inlined_call_operand.vmem [shape: f32[1,128], index: 5, kind: input, shape index: {}]
  %s6 = inlined_call_operand.vmem [shape: bf16[128,128], index: 6, kind: input, shape index: {}]
  %s7 = inlined_call_operand.vmem [shape: f32[1,128], index: 7, kind: input, shape index: {}]
  %s8 = inlined_call_operand.vmem [shape: f32[128,128], index: 8, kind: output, shape index: {}]
  %s9 = sld [smem:[#allocation0]]
  $region73: #{sparse_cin_forward.1} parent=0
    _
  %s11 = ssub.s32 1, %s9
  %s12 = scalar_select 0, %s11, %s9
  loop: start=0, step=1, limit=6
  $region2: #{sparse_cin_forward.1} parent=0 // loop_pre_header
    _
  $region3: #{sparse_cin_forward.1} parent=0 // loop_header
    %s14 = sphi 0, %s18
    %p15 = scmp.ge.s32.totalorder %s14, 6
    %s22 = sphi 0, %s22
    %s24 = sphi 0, %s22
    %s25 = sphi 0, %s24
    %s39 = sphi 0, %s25
    %s43 = sphi 0, %s43
    %s45 = sphi 0, %s43
    %s46 = sphi 0, %s45
    %s60 = sphi 0, %s46
    %s66 = sphi 0, %s68
    %s69 = sphi 0, %s66
    %s70 = sphi 0, %s69
    %s86 = sphi 0, %s70
    %s92 = sphi 0, %s94
    %s95 = sphi 0, %s92
    %s96 = sphi 0, %s95
    %s112 = sphi 0, %s96
    %s116 = sphi 0, %s116
    %s118 = sphi 0, %s116
    %s119 = sphi 0, %s118
    %s133 = sphi 0, %s119
    %s137 = sphi 0, %s137
    %s139 = sphi 0, %s137
    %s140 = sphi 0, %s139
    %s154 = sphi 0, %s140
    %s158 = sphi 0, %s158
    %s160 = sphi 0, %s158
    %s161 = sphi 0, %s160
    %s175 = sphi 0, %s161
    %s179 = sphi 0, %s179
    %s181 = sphi 0, %s179
    %s182 = sphi 0, %s181
    %s196 = sphi 0, %s182
    %s200 = sphi 0, %s200
    %s202 = sphi 0, %s200
    %s203 = sphi 0, %s202
    %s217 = sphi 0, %s203
  $region4: #{sparse_cin_forward.1} parent=0 // loop_header_branch
    %17 = sbr.rel (%p15) target = $region8
  $region5: #{sparse_cin_forward.1} parent=0 // loop_body
    %s19 = ssub.s32 %s14, 1
    %s20 = ssub.s32 %s14, 2
    %s21 = sadd.s32 %s14, 1
    %s23 = sadd.s32 %s22, 1
    %p26 = scmp.eq.s32.totalorder %s14, 3
    %p27 = scmp.ne.s32.totalorder %s22, %s24
    %p28 = scmp.eq.s32.totalorder %s14, 0
    %p29 = por %p27, %p28
    %p30 = scmp.ne.s32.totalorder %s22, %s24
    %p31 = scmp.eq.s32.totalorder %s19, 3
    %p32 = por %p30, %p31
    %p33 = scmp.ne.s32.totalorder %s24, %s25
    %p34 = scmp.eq.s32.totalorder %s19, 0
    %p35 = por %p33, %p34
    %p36 = scmp.ne.s32.totalorder %s24, %s25
    %p37 = scmp.eq.s32.totalorder %s20, 3
    %p38 = por %p36, %p37
    %p40 = scmp.ne.s32.totalorder %s25, %s39
    %p41 = scmp.eq.s32.totalorder %s20, 0
    %p42 = por %p40, %p41
    %s44 = sadd.s32 %s43, 1
    %p47 = scmp.eq.s32.totalorder %s14, 3
    %p48 = scmp.ne.s32.totalorder %s43, %s45
    %p49 = scmp.eq.s32.totalorder %s14, 0
    %p50 = por %p48, %p49
    %p51 = scmp.ne.s32.totalorder %s43, %s45
    %p52 = scmp.eq.s32.totalorder %s19, 3
    %p53 = por %p51, %p52
    %p54 = scmp.ne.s32.totalorder %s45, %s46
    %p55 = scmp.eq.s32.totalorder %s19, 0
    %p56 = por %p54, %p55
    %p57 = scmp.ne.s32.totalorder %s45, %s46
    %p58 = scmp.eq.s32.totalorder %s20, 3
    %p59 = por %p57, %p58
    %p61 = scmp.ne.s32.totalorder %s46, %s60
    %p62 = scmp.eq.s32.totalorder %s20, 0
    %p63 = por %p61, %p62
    %s64 = ssub.s32 %s14, %s21
    %p65 = scmp.eq.s32.totalorder %s64, 0
    %s67 = sadd.s32 %s66, 1
    %s68 = scalar_select %p65, %s66, %s67
    %p71 = pneg %p65
    %p72 = scmp.eq.s32.totalorder %s14, 3
    %p73 = por %p71, %p72
    %p74 = scmp.ne.s32.totalorder %s66, %s69
    %p75 = scmp.eq.s32.totalorder %s14, 0
    %p76 = por %p74, %p75
    %p77 = scmp.ne.s32.totalorder %s66, %s69
    %p78 = scmp.eq.s32.totalorder %s19, 3
    %p79 = por %p77, %p78
    %p80 = scmp.ne.s32.totalorder %s69, %s70
    %p81 = scmp.eq.s32.totalorder %s19, 0
    %p82 = por %p80, %p81
    %p83 = scmp.ne.s32.totalorder %s69, %s70
    %p84 = scmp.eq.s32.totalorder %s20, 3
    %p85 = por %p83, %p84
    %p87 = scmp.ne.s32.totalorder %s70, %s86
    %p88 = scmp.eq.s32.totalorder %s20, 0
    %p89 = por %p87, %p88
    %s90 = ssub.s32 %s14, %s21
    %p91 = scmp.eq.s32.totalorder %s90, 0
    %s93 = sadd.s32 %s92, 1
    %s94 = scalar_select %p91, %s92, %s93
    %p97 = pneg %p91
    %p98 = scmp.eq.s32.totalorder %s14, 3
    %p99 = por %p97, %p98
    %p100 = scmp.ne.s32.totalorder %s92, %s95
    %p101 = scmp.eq.s32.totalorder %s14, 0
    %p102 = por %p100, %p101
    %p103 = scmp.ne.s32.totalorder %s92, %s95
    %p104 = scmp.eq.s32.totalorder %s19, 3
    %p105 = por %p103, %p104
    %p106 = scmp.ne.s32.totalorder %s95, %s96
    %p107 = scmp.eq.s32.totalorder %s19, 0
    %p108 = por %p106, %p107
    %p109 = scmp.ne.s32.totalorder %s95, %s96
    %p110 = scmp.eq.s32.totalorder %s20, 3
    %p111 = por %p109, %p110
    %p113 = scmp.ne.s32.totalorder %s96, %s112
    %p114 = scmp.eq.s32.totalorder %s20, 0
    %p115 = por %p113, %p114
    %s117 = sadd.s32 %s116, 1
    %p120 = scmp.eq.s32.totalorder %s14, 3
    %p121 = scmp.ne.s32.totalorder %s116, %s118
    %p122 = scmp.eq.s32.totalorder %s14, 0
    %p123 = por %p121, %p122
    %p124 = scmp.ne.s32.totalorder %s116, %s118
    %p125 = scmp.eq.s32.totalorder %s19, 3
    %p126 = por %p124, %p125
    %p127 = scmp.ne.s32.totalorder %s118, %s119
    %p128 = scmp.eq.s32.totalorder %s19, 0
    %p129 = por %p127, %p128
    %p130 = scmp.ne.s32.totalorder %s118, %s119
    %p131 = scmp.eq.s32.totalorder %s20, 3
    %p132 = por %p130, %p131
    %p134 = scmp.ne.s32.totalorder %s119, %s133
    %p135 = scmp.eq.s32.totalorder %s20, 0
    %p136 = por %p134, %p135
    %s138 = sadd.s32 %s137, 1
    %p141 = scmp.eq.s32.totalorder %s14, 3
    %p142 = scmp.ne.s32.totalorder %s137, %s139
    %p143 = scmp.eq.s32.totalorder %s14, 0
    %p144 = por %p142, %p143
    %p145 = scmp.ne.s32.totalorder %s137, %s139
    %p146 = scmp.eq.s32.totalorder %s19, 3
    %p147 = por %p145, %p146
    %p148 = scmp.ne.s32.totalorder %s139, %s140
    %p149 = scmp.eq.s32.totalorder %s19, 0
    %p150 = por %p148, %p149
    %p151 = scmp.ne.s32.totalorder %s139, %s140
    %p152 = scmp.eq.s32.totalorder %s20, 3
    %p153 = por %p151, %p152
    %p155 = scmp.ne.s32.totalorder %s140, %s154
    %p156 = scmp.eq.s32.totalorder %s20, 0
    %p157 = por %p155, %p156
    %s159 = sadd.s32 %s158, 1
    %p162 = scmp.eq.s32.totalorder %s14, 3
    %p163 = scmp.ne.s32.totalorder %s158, %s160
    %p164 = scmp.eq.s32.totalorder %s14, 0
    %p165 = por %p163, %p164
    %p166 = scmp.ne.s32.totalorder %s158, %s160
    %p167 = scmp.eq.s32.totalorder %s19, 3
    %p168 = por %p166, %p167
    %p169 = scmp.ne.s32.totalorder %s160, %s161
    %p170 = scmp.eq.s32.totalorder %s19, 0
    %p171 = por %p169, %p170
    %p172 = scmp.ne.s32.totalorder %s160, %s161
    %p173 = scmp.eq.s32.totalorder %s20, 3
    %p174 = por %p172, %p173
    %p176 = scmp.ne.s32.totalorder %s161, %s175
    %p177 = scmp.eq.s32.totalorder %s20, 0
    %p178 = por %p176, %p177
    %s180 = sadd.s32 %s179, 1
    %p183 = scmp.eq.s32.totalorder %s14, 3
    %p184 = scmp.ne.s32.totalorder %s179, %s181
    %p185 = scmp.eq.s32.totalorder %s14, 0
    %p186 = por %p184, %p185
    %p187 = scmp.ne.s32.totalorder %s179, %s181
    %p188 = scmp.eq.s32.totalorder %s19, 3
    %p189 = por %p187, %p188
    %p190 = scmp.ne.s32.totalorder %s181, %s182
    %p191 = scmp.eq.s32.totalorder %s19, 0
    %p192 = por %p190, %p191
    %p193 = scmp.ne.s32.totalorder %s181, %s182
    %p194 = scmp.eq.s32.totalorder %s20, 3
    %p195 = por %p193, %p194
    %p197 = scmp.ne.s32.totalorder %s182, %s196
    %p198 = scmp.eq.s32.totalorder %s20, 0
    %p199 = por %p197, %p198
    %s201 = sadd.s32 %s200, 1
    %p204 = scmp.eq.s32.totalorder %s14, 3
    %p205 = scmp.ne.s32.totalorder %s200, %s202
    %p206 = scmp.eq.s32.totalorder %s14, 0
    %p207 = por %p205, %p206
    %p208 = scmp.ne.s32.totalorder %s200, %s202
    %p209 = scmp.eq.s32.totalorder %s19, 3
    %p210 = por %p208, %p209
    %p211 = scmp.ne.s32.totalorder %s202, %s203
    %p212 = scmp.eq.s32.totalorder %s19, 0
    %p213 = por %p211, %p212
    %p214 = scmp.ne.s32.totalorder %s202, %s203
    %p215 = scmp.eq.s32.totalorder %s20, 3
    %p216 = por %p214, %p215
    %p218 = scmp.ne.s32.totalorder %s203, %s217
    %p219 = scmp.eq.s32.totalorder %s20, 0
    %p220 = por %p218, %p219
    %p221 = scmp.le.s32.totalorder 1, %s14
    %p222 = scmp.lt.s32.totalorder %s14, 5
    %p223 = pnand %p221, %p222
    %p224 = pneg %p223
    // Predicated region
    $region9: #{sparse_cin_forward.1} parent=5 // pred_check
      _
    $region10: #{sparse_cin_forward.1} parent=5 // pred_check_branch
      %226 = sbr.rel (%p223) target = $region12
    $region11: #{sparse_cin_forward.1} parent=5 // pred_region
      %s227 = ssub.s32 %s14, 1
      // Predicated region
      $region13: #{sparse_cin_forward.1} parent=11 // pred_check
        %p228 = pneg %p35
      $region14: #{sparse_cin_forward.1} parent=11 // pred_check_branch
        %230 = sbr.rel (%p228) target = $region16
      $region15: #{sparse_cin_forward.1} parent=11 // pred_region
        _
      $region16: #{sparse_cin_forward.1} parent=11 // pred_fallthru
        _
      // Predicated region
      $region17: #{sparse_cin_forward.1} parent=11 // pred_check
        %p231 = pneg %p56
      $region18: #{sparse_cin_forward.1} parent=11 // pred_check_branch
        %233 = sbr.rel (%p231) target = $region20
      $region19: #{sparse_cin_forward.1} parent=11 // pred_region
        _
      $region20: #{sparse_cin_forward.1} parent=11 // pred_fallthru
        _
      // Predicated region
      $region21: #{sparse_cin_forward.1} parent=11 // pred_check
        %p234 = pneg %p129
      $region22: #{sparse_cin_forward.1} parent=11 // pred_check_branch
        %236 = sbr.rel (%p234) target = $region24
      $region23: #{sparse_cin_forward.1} parent=11 // pred_region
        _
      $region24: #{sparse_cin_forward.1} parent=11 // pred_fallthru
        _
      // Predicated region
      $region25: #{sparse_cin_forward.1} parent=11 // pred_check
        %p237 = pneg %p150
      $region26: #{sparse_cin_forward.1} parent=11 // pred_check_branch
        %239 = sbr.rel (%p237) target = $region28
      $region27: #{sparse_cin_forward.1} parent=11 // pred_region
        _
      $region28: #{sparse_cin_forward.1} parent=11 // pred_fallthru
        _
      // Predicated region
      $region29: #{sparse_cin_forward.1} parent=11 // pred_check
        %p240 = pneg %p171
      $region30: #{sparse_cin_forward.1} parent=11 // pred_check_branch
        %242 = sbr.rel (%p240) target = $region32
      $region31: #{sparse_cin_forward.1} parent=11 // pred_region
        _
      $region32: #{sparse_cin_forward.1} parent=11 // pred_fallthru
        _
      // Predicated region
      $region33: #{sparse_cin_forward.1} parent=11 // pred_check
        %p243 = pneg %p192
      $region34: #{sparse_cin_forward.1} parent=11 // pred_check_branch
        %245 = sbr.rel (%p243) target = $region36
      $region35: #{sparse_cin_forward.1} parent=11 // pred_region
        _
      $region36: #{sparse_cin_forward.1} parent=11 // pred_fallthru
        _
    $region12: #{sparse_cin_forward.1} parent=5 // pred_fallthru
      _
    %p246 = scmp.lt.s32.totalorder %s14, 4
    // Predicated region
    $region37: #{sparse_cin_forward.1} parent=5 // pred_check
      %p247 = pneg %p246
    $region38: #{sparse_cin_forward.1} parent=5 // pred_check_branch
      %249 = sbr.rel (%p247) target = $region40
    $region39: #{sparse_cin_forward.1} parent=5 // pred_region
      // Predicated region
      $region41: #{sparse_cin_forward.1} parent=39 // pred_check
        %p250 = pneg %p76
      $region42: #{sparse_cin_forward.1} parent=39 // pred_check_branch
        %252 = sbr.rel (%p250) target = $region44
      $region43: #{sparse_cin_forward.1} parent=39 // pred_region
        %p253 = scmp.lt.s32.totalorder %s14, 3
        %s254 = scalar_select %p253, %s14, 3
        %s255 = smul.addr %s254, 16
        %s256 = smul.addr %s255, 4
        %s257 = scalar_lea.vmem %s2, %s256
      $region44: #{sparse_cin_forward.1} parent=39 // pred_fallthru
        _
      // Predicated region
      $region45: #{sparse_cin_forward.1} parent=39 // pred_check
        %p258 = pneg %p102
      $region46: #{sparse_cin_forward.1} parent=39 // pred_check_branch
        %260 = sbr.rel (%p258) target = $region48
      $region47: #{sparse_cin_forward.1} parent=39 // pred_region
        %p261 = scmp.lt.s32.totalorder %s14, 3
        %s262 = scalar_select %p261, %s14, 3
        %s263 = scalar_lea.vmem %s3, %s262
      $region48: #{sparse_cin_forward.1} parent=39 // pred_fallthru
        _
    $region40: #{sparse_cin_forward.1} parent=5 // pred_fallthru
      _
    %p264 = scmp.le.s32.totalorder 1, %s14
    %p265 = scmp.lt.s32.totalorder %s14, 5
    %p266 = pnand %p264, %p265
    %p267 = pneg %p266
    // Predicated region
    $region49: #{sparse_cin_forward.1} parent=5 // pred_check
      _
    $region50: #{sparse_cin_forward.1} parent=5 // pred_check_branch
      %269 = sbr.rel (%p266) target = $region52
    $region51: #{sparse_cin_forward.1} parent=5 // pred_region
      %s270 = ssub.s32 %s14, 1
      %p271 = pneg %p35
      %p272 = pneg %p32
      %p273 = pneg %p56
      %p274 = pneg %p53
      %p275 = scmp.lt.s32.totalorder %s19, 3
      %s276 = scalar_select %p275, %s19, 3
      %s277 = smul.addr %s276, 16
      %s278 = smul.addr %s277, 4
      %s279 = scalar_lea.vmem %s2, %s278
      %p280 = pneg %p82
      %p281 = pneg %p79
      %p282 = scmp.lt.s32.totalorder %s19, 3
      %s283 = scalar_select %p282, %s19, 3
      %s284 = scalar_lea.vmem %s3, %s283
      %p285 = pneg %p108
      %p286 = pneg %p105
      %p287 = pneg %p129
      %p288 = pneg %p126
      %p289 = pneg %p150
      %p290 = pneg %p147
      %p291 = pneg %p171
      %p292 = pneg %p168
      %p293 = pneg %p192
      %p294 = pneg %p189
      %p295 = pneg %p213
      %p296 = pneg %p210
      %p297 = scmp.lt.s32.totalorder %s19, 3
      %s298 = scalar_select %p297, %s19, 3
      %s299 = smul.addr %s298, 16
      %s300 = smul.addr %s299, 4
      %s301 = scalar_lea.vmem %s2, %s300
      %p302 = scmp.lt.s32.totalorder %s19, 3
      %s303 = scalar_select %p302, %s19, 3
      %s304 = scalar_lea.vmem %s3, %s303
      %p305 = scmp.eq.s32.totalorder %s19, 0
      // Predicated region
      $region53: #{sparse_cin_forward.1} parent=51 // pred_check
        %p306 = pneg %p305
      $region54: #{sparse_cin_forward.1} parent=51 // pred_check_branch
        %308 = sbr.rel (%p306) target = $region56
      $region55: #{sparse_cin_forward.1} parent=51 // pred_region
        %v309 = vld [vmem:[%s1] sm:$0xf]
        %v310 = vld [vmem:[%s1 + $0x4] sm:$0xf]
        %v311 = vld [vmem:[%s1 + $0x8] sm:$0xf]
        %v312 = vld [vmem:[%s1 + $0xc] sm:$0xf]
        %v313 = vld [vmem:[%s1 + $0x10] sm:$0xf]
        %v314 = vld [vmem:[%s1 + $0x14] sm:$0xf]
        %v315 = vld [vmem:[%s1 + $0x18] sm:$0xf]
        %v316 = vld [vmem:[%s1 + $0x1c] sm:$0xf]
        %v317 = vld [vmem:[%s1 + $0x20] sm:$0xf]
        %v318 = vld [vmem:[%s1 + $0x24] sm:$0xf]
        %v319 = vld [vmem:[%s1 + $0x28] sm:$0xf]
        %v320 = vld [vmem:[%s1 + $0x2c] sm:$0xf]
        %v321 = vld [vmem:[%s1 + $0x30] sm:$0xf]
        %v322 = vld [vmem:[%s1 + $0x34] sm:$0xf]
        %v323 = vld [vmem:[%s1 + $0x38] sm:$0xf]
        %v324 = vld [vmem:[%s1 + $0x3c] sm:$0xf]
        %325 = vst [vmem:[#allocation2] sm:$0xf] %v309
        %326 = vst [vmem:[#allocation2 + $0x4] sm:$0xf] %v310
        %327 = vst [vmem:[#allocation2 + $0x8] sm:$0xf] %v311
        %328 = vst [vmem:[#allocation2 + $0xc] sm:$0xf] %v312
        %329 = vst [vmem:[#allocation2 + $0x10] sm:$0xf] %v313
        %330 = vst [vmem:[#allocation2 + $0x14] sm:$0xf] %v314
        %331 = vst [vmem:[#allocation2 + $0x18] sm:$0xf] %v315
        %332 = vst [vmem:[#allocation2 + $0x1c] sm:$0xf] %v316
        %333 = vst [vmem:[#allocation2 + $0x20] sm:$0xf] %v317
        %334 = vst [vmem:[#allocation2 + $0x24] sm:$0xf] %v318
        %335 = vst [vmem:[#allocation2 + $0x28] sm:$0xf] %v319
        %336 = vst [vmem:[#allocation2 + $0x2c] sm:$0xf] %v320
        %337 = vst [vmem:[#allocation2 + $0x30] sm:$0xf] %v321
        %338 = vst [vmem:[#allocation2 + $0x34] sm:$0xf] %v322
        %339 = vst [vmem:[#allocation2 + $0x38] sm:$0xf] %v323
        %340 = vst [vmem:[#allocation2 + $0x3c] sm:$0xf] %v324
      $region56: #{sparse_cin_forward.1} parent=51 // pred_fallthru
        _
      %v341 = vld [vmem:[#allocation2] sm:$0xf]
      %v342 = vld [vmem:[#allocation2 + $0x4] sm:$0xf]
      %v343 = vld [vmem:[#allocation2 + $0x8] sm:$0xf]
      %v344 = vld [vmem:[#allocation2 + $0xc] sm:$0xf]
      %v345 = vld [vmem:[#allocation2 + $0x10] sm:$0xf]
      %v346 = vld [vmem:[#allocation2 + $0x14] sm:$0xf]
      %v347 = vld [vmem:[#allocation2 + $0x18] sm:$0xf]
      %v348 = vld [vmem:[#allocation2 + $0x1c] sm:$0xf]
      %v349 = vld [vmem:[#allocation2 + $0x20] sm:$0xf]
      %v350 = vld [vmem:[#allocation2 + $0x24] sm:$0xf]
      %v351 = vld [vmem:[#allocation2 + $0x28] sm:$0xf]
      %v352 = vld [vmem:[#allocation2 + $0x2c] sm:$0xf]
      %v353 = vld [vmem:[#allocation2 + $0x30] sm:$0xf]
      %v354 = vld [vmem:[#allocation2 + $0x34] sm:$0xf]
      %v355 = vld [vmem:[#allocation2 + $0x38] sm:$0xf]
      %v356 = vld [vmem:[#allocation2 + $0x3c] sm:$0xf]
      %v357 = vld [vmem:[%s0] sm:$0xf]
      %v358 = vld [vmem:[%s0 + $0x4] sm:$0xf]
      %v359 = vld [vmem:[%s0 + $0x8] sm:$0xf]
      %v360 = vld [vmem:[%s0 + $0xc] sm:$0xf]
      %v361 = vld [vmem:[%s0 + $0x10] sm:$0xf]
      %v362 = vld [vmem:[%s0 + $0x14] sm:$0xf]
      %v363 = vld [vmem:[%s0 + $0x18] sm:$0xf]
      %v364 = vld [vmem:[%s0 + $0x1c] sm:$0xf]
      %v365 = vld [vmem:[%s0 + $0x20] sm:$0xf]
      %v366 = vld [vmem:[%s0 + $0x24] sm:$0xf]
      %v367 = vld [vmem:[%s0 + $0x28] sm:$0xf]
      %v368 = vld [vmem:[%s0 + $0x2c] sm:$0xf]
      %v369 = vld [vmem:[%s0 + $0x30] sm:$0xf]
      %v370 = vld [vmem:[%s0 + $0x34] sm:$0xf]
      %v371 = vld [vmem:[%s0 + $0x38] sm:$0xf]
      %v372 = vld [vmem:[%s0 + $0x3c] sm:$0xf]
      %v389 = vunpack.c.l.b16 %v357
      %v390 = vunpack.c.l.b16 %v358
      %v391 = vunpack.c.l.b16 %v359
      %v392 = vunpack.c.l.b16 %v360
      %v393 = vunpack.c.l.b16 %v361
      %v394 = vunpack.c.l.b16 %v362
      %v395 = vunpack.c.l.b16 %v363
      %v396 = vunpack.c.l.b16 %v364
      %v397 = vunpack.c.l.b16 %v365
      %v398 = vunpack.c.l.b16 %v366
      %v399 = vunpack.c.l.b16 %v367
      %v400 = vunpack.c.l.b16 %v368
      %v401 = vunpack.c.l.b16 %v369
      %v402 = vunpack.c.l.b16 %v370
      %v403 = vunpack.c.l.b16 %v371
      %v404 = vunpack.c.l.b16 %v372
      %v405 = vpack.c.b16 %v390, %v389
      %v406 = vpack.c.b16 %v392, %v391
      %v407 = vpack.c.b16 %v394, %v393
      %v408 = vpack.c.b16 %v396, %v395
      %v409 = vpack.c.b16 %v398, %v397
      %v410 = vpack.c.b16 %v400, %v399
      %v411 = vpack.c.b16 %v402, %v401
      %v412 = vpack.c.b16 %v404, %v403
      %v437 = vunpack.c.l.b16 %v341
      %v438 = vunpack.c.l.b16 %v342
      %v439 = vunpack.c.l.b16 %v343
      %v440 = vunpack.c.l.b16 %v344
      %v441 = vunpack.c.l.b16 %v345
      %v442 = vunpack.c.l.b16 %v346
      %v443 = vunpack.c.l.b16 %v347
      %v444 = vunpack.c.l.b16 %v348
      %v445 = vunpack.c.l.b16 %v349
      %v446 = vunpack.c.l.b16 %v350
      %v447 = vunpack.c.l.b16 %v351
      %v448 = vunpack.c.l.b16 %v352
      %v449 = vunpack.c.l.b16 %v353
      %v450 = vunpack.c.l.b16 %v354
      %v451 = vunpack.c.l.b16 %v355
      %v452 = vunpack.c.l.b16 %v356
      %v453 = vpack.c.b16 %v438, %v437
      %v454 = vpack.c.b16 %v440, %v439
      %v455 = vpack.c.b16 %v442, %v441
      %v456 = vpack.c.b16 %v444, %v443
      %v457 = vpack.c.b16 %v446, %v445
      %v458 = vpack.c.b16 %v448, %v447
      %v459 = vpack.c.b16 %v450, %v449
      %v460 = vpack.c.b16 %v452, %v451
      %469 = vmatpush.bf16.msra.mxu0 %v460
      %470 = vmatpush.bf16.msra.mxu0 %v459
      %471 = vmatpush.bf16.msra.mxu0 %v458
      %472 = vmatpush.bf16.msra.mxu0 %v457
      %473 = vmatpush.bf16.msra.mxu0 %v456
      %474 = vmatpush.bf16.msra.mxu0 %v455
      %475 = vmatpush.bf16.msra.mxu0 %v454
      %476 = vmatpush.bf16.msra.mxu0 %v453
      %477 = vmatmul.bf16.gmra.mxu0 %v405
      %v478 = vpop.f32.mrf.mxu0
      %v479 = vadd.f32 0.0, %v478
      %v480 = vpop.f32.mrf.mxu0
      %v481 = vadd.f32 0.0, %v480
      %482 = vmatmul.bf16.gmra.mxu0 %v406
      %v483 = vpop.f32.mrf.mxu0
      %v484 = vadd.f32 0.0, %v483
      %v485 = vpop.f32.mrf.mxu0
      %v486 = vadd.f32 0.0, %v485
      %487 = vmatmul.bf16.gmra.mxu0 %v407
      %v488 = vpop.f32.mrf.mxu0
      %v489 = vadd.f32 0.0, %v488
      %v490 = vpop.f32.mrf.mxu0
      %v491 = vadd.f32 0.0, %v490
      %492 = vmatmul.bf16.gmra.mxu0 %v408
      %v493 = vpop.f32.mrf.mxu0
      %v494 = vadd.f32 0.0, %v493
      %v495 = vpop.f32.mrf.mxu0
      %v496 = vadd.f32 0.0, %v495
      %497 = vmatmul.bf16.gmra.mxu0 %v409
      %v498 = vpop.f32.mrf.mxu0
      %v499 = vadd.f32 0.0, %v498
      %v500 = vpop.f32.mrf.mxu0
      %v501 = vadd.f32 0.0, %v500
      %502 = vmatmul.bf16.gmra.mxu0 %v410
      %v503 = vpop.f32.mrf.mxu0
      %v504 = vadd.f32 0.0, %v503
      %v505 = vpop.f32.mrf.mxu0
      %v506 = vadd.f32 0.0, %v505
      %507 = vmatmul.bf16.gmra.mxu0 %v411
      %v508 = vpop.f32.mrf.mxu0
      %v509 = vadd.f32 0.0, %v508
      %v510 = vpop.f32.mrf.mxu0
      %v511 = vadd.f32 0.0, %v510
      %512 = vmatmul.bf16.gmra.mxu0 %v412
      %v513 = vpop.f32.mrf.mxu0
      %v514 = vadd.f32 0.0, %v513
      %v515 = vpop.f32.mrf.mxu0
      %v516 = vadd.f32 0.0, %v515
      %517 = vdwg.mxu0
      %v518 = vpack.c.bf16 %v481, %v479
      %v519 = vpack.c.bf16 %v486, %v484
      %v520 = vpack.c.bf16 %v491, %v489
      %v521 = vpack.c.bf16 %v496, %v494
      %v522 = vpack.c.bf16 %v501, %v499
      %v523 = vpack.c.bf16 %v506, %v504
      %v524 = vpack.c.bf16 %v511, %v509
      %v525 = vpack.c.bf16 %v516, %v514
      %v526 = vld [vmem:[%s301] sm:$0xf]
      %v527 = vld [vmem:[%s301 + $0x4] sm:$0xf]
      %v528 = vld [vmem:[%s301 + $0x8] sm:$0xf]
      %v529 = vld [vmem:[%s301 + $0xc] sm:$0xf]
      %v530 = vld [vmem:[%s301 + $0x10] sm:$0xf]
      %v531 = vld [vmem:[%s301 + $0x14] sm:$0xf]
      %v532 = vld [vmem:[%s301 + $0x18] sm:$0xf]
      %v533 = vld [vmem:[%s301 + $0x1c] sm:$0xf]
      %v534 = vld [vmem:[%s301 + $0x20] sm:$0xf]
      %v535 = vld [vmem:[%s301 + $0x24] sm:$0xf]
      %v536 = vld [vmem:[%s301 + $0x28] sm:$0xf]
      %v537 = vld [vmem:[%s301 + $0x2c] sm:$0xf]
      %v538 = vld [vmem:[%s301 + $0x30] sm:$0xf]
      %v539 = vld [vmem:[%s301 + $0x34] sm:$0xf]
      %v540 = vld [vmem:[%s301 + $0x38] sm:$0xf]
      %v541 = vld [vmem:[%s301 + $0x3c] sm:$0xf]
      %v542 = vld [vmem:[%s304] sm:$0x1]
      %v544 = vperm.slane %v542, 0
      %v562 = vunpack.c.l.b16 %v526
      %v563 = vunpack.c.l.b16 %v527
      %v564 = vunpack.c.l.b16 %v528
      %v565 = vunpack.c.l.b16 %v529
      %v566 = vunpack.c.l.b16 %v530
      %v567 = vunpack.c.l.b16 %v531
      %v568 = vunpack.c.l.b16 %v532
      %v569 = vunpack.c.l.b16 %v533
      %v570 = vunpack.c.l.b16 %v534
      %v571 = vunpack.c.l.b16 %v535
      %v572 = vunpack.c.l.b16 %v536
      %v573 = vunpack.c.l.b16 %v537
      %v574 = vunpack.c.l.b16 %v538
      %v575 = vunpack.c.l.b16 %v539
      %v576 = vunpack.c.l.b16 %v540
      %v577 = vunpack.c.l.b16 %v541
      %v578 = vpack.c.b16 %v563, %v562
      %v579 = vpack.c.b16 %v565, %v564
      %v580 = vpack.c.b16 %v567, %v566
      %v581 = vpack.c.b16 %v569, %v568
      %v582 = vpack.c.b16 %v571, %v570
      %v583 = vpack.c.b16 %v573, %v572
      %v584 = vpack.c.b16 %v575, %v574
      %v585 = vpack.c.b16 %v577, %v576
      %594 = vmatpush.bf16.msra.mxu0 %v585
      %595 = vmatpush.bf16.msra.mxu0 %v584
      %596 = vmatpush.bf16.msra.mxu0 %v583
      %597 = vmatpush.bf16.msra.mxu0 %v582
      %598 = vmatpush.bf16.msra.mxu0 %v581
      %599 = vmatpush.bf16.msra.mxu0 %v580
      %600 = vmatpush.bf16.msra.mxu0 %v579
      %601 = vmatpush.bf16.msra.mxu0 %v578
      %602 = vmatmul.bf16.gmra.mxu0 %v518
      %v603 = vpop.f32.mrf.mxu0
      %v604 = vadd.f32 %v544, %v603
      %v605 = vpop.f32.mrf.mxu0
      %v606 = vadd.f32 %v544, %v605
      %607 = vmatmul.bf16.gmra.mxu0 %v519
      %v608 = vpop.f32.mrf.mxu0
      %v609 = vadd.f32 %v544, %v608
      %v610 = vpop.f32.mrf.mxu0
      %v611 = vadd.f32 %v544, %v610
      %612 = vmatmul.bf16.gmra.mxu0 %v520
      %v613 = vpop.f32.mrf.mxu0
      %v614 = vadd.f32 %v544, %v613
      %v615 = vpop.f32.mrf.mxu0
      %v616 = vadd.f32 %v544, %v615
      %617 = vmatmul.bf16.gmra.mxu0 %v521
      %v618 = vpop.f32.mrf.mxu0
      %v619 = vadd.f32 %v544, %v618
      %v620 = vpop.f32.mrf.mxu0
      %v621 = vadd.f32 %v544, %v620
      %622 = vmatmul.bf16.gmra.mxu0 %v522
      %v623 = vpop.f32.mrf.mxu0
      %v624 = vadd.f32 %v544, %v623
      %v625 = vpop.f32.mrf.mxu0
      %v626 = vadd.f32 %v544, %v625
      %627 = vmatmul.bf16.gmra.mxu0 %v523
      %v628 = vpop.f32.mrf.mxu0
      %v629 = vadd.f32 %v544, %v628
      %v630 = vpop.f32.mrf.mxu0
      %v631 = vadd.f32 %v544, %v630
      %632 = vmatmul.bf16.gmra.mxu0 %v524
      %v633 = vpop.f32.mrf.mxu0
      %v634 = vadd.f32 %v544, %v633
      %v635 = vpop.f32.mrf.mxu0
      %v636 = vadd.f32 %v544, %v635
      %637 = vmatmul.bf16.gmra.mxu0 %v525
      %v638 = vpop.f32.mrf.mxu0
      %v639 = vadd.f32 %v544, %v638
      %v640 = vpop.f32.mrf.mxu0
      %v641 = vadd.f32 %v544, %v640
      %642 = vdwg.mxu0
      %v643 = vmax.f32 %v604, 0.0
      %v644 = vmax.f32 %v606, 0.0
      %v645 = vmax.f32 %v609, 0.0
      %v646 = vmax.f32 %v611, 0.0
      %v647 = vmax.f32 %v614, 0.0
      %v648 = vmax.f32 %v616, 0.0
      %v649 = vmax.f32 %v619, 0.0
      %v650 = vmax.f32 %v621, 0.0
      %v651 = vmax.f32 %v624, 0.0
      %v652 = vmax.f32 %v626, 0.0
      %v653 = vmax.f32 %v629, 0.0
      %v654 = vmax.f32 %v631, 0.0
      %v655 = vmax.f32 %v634, 0.0
      %v656 = vmax.f32 %v636, 0.0
      %v657 = vmax.f32 %v639, 0.0
      %v658 = vmax.f32 %v641, 0.0
      %v659 = vpack.c.bf16 %v643, %v643
      %v660 = vpack.c.bf16 %v644, %v644
      %v661 = vpack.c.bf16 %v645, %v645
      %v662 = vpack.c.bf16 %v646, %v646
      %v663 = vpack.c.bf16 %v647, %v647
      %v664 = vpack.c.bf16 %v648, %v648
      %v665 = vpack.c.bf16 %v649, %v649
      %v666 = vpack.c.bf16 %v650, %v650
      %v667 = vpack.c.bf16 %v651, %v651
      %v668 = vpack.c.bf16 %v652, %v652
      %v669 = vpack.c.bf16 %v653, %v653
      %v670 = vpack.c.bf16 %v654, %v654
      %v671 = vpack.c.bf16 %v655, %v655
      %v672 = vpack.c.bf16 %v656, %v656
      %v673 = vpack.c.bf16 %v657, %v657
      %v674 = vpack.c.bf16 %v658, %v658
      %675 = vst [vmem:[#allocation2] sm:$0xf] %v659
      %676 = vst [vmem:[#allocation2 + $0x4] sm:$0xf] %v660
      %677 = vst [vmem:[#allocation2 + $0x8] sm:$0xf] %v661
      %678 = vst [vmem:[#allocation2 + $0xc] sm:$0xf] %v662
      %679 = vst [vmem:[#allocation2 + $0x10] sm:$0xf] %v663
      %680 = vst [vmem:[#allocation2 + $0x14] sm:$0xf] %v664
      %681 = vst [vmem:[#allocation2 + $0x18] sm:$0xf] %v665
      %682 = vst [vmem:[#allocation2 + $0x1c] sm:$0xf] %v666
      %683 = vst [vmem:[#allocation2 + $0x20] sm:$0xf] %v667
      %684 = vst [vmem:[#allocation2 + $0x24] sm:$0xf] %v668
      %685 = vst [vmem:[#allocation2 + $0x28] sm:$0xf] %v669
      %686 = vst [vmem:[#allocation2 + $0x2c] sm:$0xf] %v670
      %687 = vst [vmem:[#allocation2 + $0x30] sm:$0xf] %v671
      %688 = vst [vmem:[#allocation2 + $0x34] sm:$0xf] %v672
      %689 = vst [vmem:[#allocation2 + $0x38] sm:$0xf] %v673
      %690 = vst [vmem:[#allocation2 + $0x3c] sm:$0xf] %v674
      %p691 = scmp.eq.s32.totalorder %s19, 3
      // Predicated region
      $region57: #{sparse_cin_forward.1} parent=51 // pred_check
        %p692 = pneg %p691
      $region58: #{sparse_cin_forward.1} parent=51 // pred_check_branch
        %694 = sbr.rel (%p692) target = $region60
      $region59: #{sparse_cin_forward.1} parent=51 // pred_region
        %v695 = vld [vmem:[%s4] sm:$0xf]
        %v696 = vld [vmem:[%s4 + $0x4] sm:$0xf]
        %v697 = vld [vmem:[%s4 + $0x8] sm:$0xf]
        %v698 = vld [vmem:[%s4 + $0xc] sm:$0xf]
        %v699 = vld [vmem:[%s4 + $0x10] sm:$0xf]
        %v700 = vld [vmem:[%s4 + $0x14] sm:$0xf]
        %v701 = vld [vmem:[%s4 + $0x18] sm:$0xf]
        %v702 = vld [vmem:[%s4 + $0x1c] sm:$0xf]
        %v703 = vld [vmem:[%s4 + $0x20] sm:$0xf]
        %v704 = vld [vmem:[%s4 + $0x24] sm:$0xf]
        %v705 = vld [vmem:[%s4 + $0x28] sm:$0xf]
        %v706 = vld [vmem:[%s4 + $0x2c] sm:$0xf]
        %v707 = vld [vmem:[%s4 + $0x30] sm:$0xf]
        %v708 = vld [vmem:[%s4 + $0x34] sm:$0xf]
        %v709 = vld [vmem:[%s4 + $0x38] sm:$0xf]
        %v710 = vld [vmem:[%s4 + $0x3c] sm:$0xf]
        %v711 = vld [vmem:[%s5] sm:$0x1]
        %v713 = vperm.slane %v711, 0
        %v731 = vunpack.c.l.b16 %v659
        %v732 = vunpack.c.l.b16 %v660
        %v733 = vunpack.c.l.b16 %v661
        %v734 = vunpack.c.l.b16 %v662
        %v735 = vunpack.c.l.b16 %v663
        %v736 = vunpack.c.l.b16 %v664
        %v737 = vunpack.c.l.b16 %v665
        %v738 = vunpack.c.l.b16 %v666
        %v739 = vunpack.c.l.b16 %v667
        %v740 = vunpack.c.l.b16 %v668
        %v741 = vunpack.c.l.b16 %v669
        %v742 = vunpack.c.l.b16 %v670
        %v743 = vunpack.c.l.b16 %v671
        %v744 = vunpack.c.l.b16 %v672
        %v745 = vunpack.c.l.b16 %v673
        %v746 = vunpack.c.l.b16 %v674
        %v747 = vpack.c.b16 %v732, %v731
        %v748 = vpack.c.b16 %v734, %v733
        %v749 = vpack.c.b16 %v736, %v735
        %v750 = vpack.c.b16 %v738, %v737
        %v751 = vpack.c.b16 %v740, %v739
        %v752 = vpack.c.b16 %v742, %v741
        %v753 = vpack.c.b16 %v744, %v743
        %v754 = vpack.c.b16 %v746, %v745
        %v779 = vunpack.c.l.b16 %v695
        %v780 = vunpack.c.l.b16 %v696
        %v781 = vunpack.c.l.b16 %v697
        %v782 = vunpack.c.l.b16 %v698
        %v783 = vunpack.c.l.b16 %v699
        %v784 = vunpack.c.l.b16 %v700
        %v785 = vunpack.c.l.b16 %v701
        %v786 = vunpack.c.l.b16 %v702
        %v787 = vunpack.c.l.b16 %v703
        %v788 = vunpack.c.l.b16 %v704
        %v789 = vunpack.c.l.b16 %v705
        %v790 = vunpack.c.l.b16 %v706
        %v791 = vunpack.c.l.b16 %v707
        %v792 = vunpack.c.l.b16 %v708
        %v793 = vunpack.c.l.b16 %v709
        %v794 = vunpack.c.l.b16 %v710
        %v795 = vpack.c.b16 %v780, %v779
        %v796 = vpack.c.b16 %v782, %v781
        %v797 = vpack.c.b16 %v784, %v783
        %v798 = vpack.c.b16 %v786, %v785
        %v799 = vpack.c.b16 %v788, %v787
        %v800 = vpack.c.b16 %v790, %v789
        %v801 = vpack.c.b16 %v792, %v791
        %v802 = vpack.c.b16 %v794, %v793
        %811 = vmatpush.bf16.msra.mxu0 %v802
        %812 = vmatpush.bf16.msra.mxu0 %v801
        %813 = vmatpush.bf16.msra.mxu0 %v800
        %814 = vmatpush.bf16.msra.mxu0 %v799
        %815 = vmatpush.bf16.msra.mxu0 %v798
        %816 = vmatpush.bf16.msra.mxu0 %v797
        %817 = vmatpush.bf16.msra.mxu0 %v796
        %818 = vmatpush.bf16.msra.mxu0 %v795
        %819 = vmatmul.bf16.gmra.mxu0 %v747
        %v820 = vpop.f32.mrf.mxu0
        %v821 = vadd.f32 %v713, %v820
        %v822 = vpop.f32.mrf.mxu0
        %v823 = vadd.f32 %v713, %v822
        %824 = vmatmul.bf16.gmra.mxu0 %v748
        %v825 = vpop.f32.mrf.mxu0
        %v826 = vadd.f32 %v713, %v825
        %v827 = vpop.f32.mrf.mxu0
        %v828 = vadd.f32 %v713, %v827
        %829 = vmatmul.bf16.gmra.mxu0 %v749
        %v830 = vpop.f32.mrf.mxu0
        %v831 = vadd.f32 %v713, %v830
        %v832 = vpop.f32.mrf.mxu0
        %v833 = vadd.f32 %v713, %v832
        %834 = vmatmul.bf16.gmra.mxu0 %v750
        %v835 = vpop.f32.mrf.mxu0
        %v836 = vadd.f32 %v713, %v835
        %v837 = vpop.f32.mrf.mxu0
        %v838 = vadd.f32 %v713, %v837
        %839 = vmatmul.bf16.gmra.mxu0 %v751
        %v840 = vpop.f32.mrf.mxu0
        %v841 = vadd.f32 %v713, %v840
        %v842 = vpop.f32.mrf.mxu0
        %v843 = vadd.f32 %v713, %v842
        %844 = vmatmul.bf16.gmra.mxu0 %v752
        %v845 = vpop.f32.mrf.mxu0
        %v846 = vadd.f32 %v713, %v845
        %v847 = vpop.f32.mrf.mxu0
        %v848 = vadd.f32 %v713, %v847
        %849 = vmatmul.bf16.gmra.mxu0 %v753
        %v850 = vpop.f32.mrf.mxu0
        %v851 = vadd.f32 %v713, %v850
        %v852 = vpop.f32.mrf.mxu0
        %v853 = vadd.f32 %v713, %v852
        %854 = vmatmul.bf16.gmra.mxu0 %v754
        %v855 = vpop.f32.mrf.mxu0
        %v856 = vadd.f32 %v713, %v855
        %v857 = vpop.f32.mrf.mxu0
        %v858 = vadd.f32 %v713, %v857
        %859 = vdwg.mxu0
        %v860 = vpack.c.bf16 %v823, %v821
        %v861 = vpack.c.bf16 %v828, %v826
        %v862 = vpack.c.bf16 %v833, %v831
        %v863 = vpack.c.bf16 %v838, %v836
        %v864 = vpack.c.bf16 %v843, %v841
        %v865 = vpack.c.bf16 %v848, %v846
        %v866 = vpack.c.bf16 %v853, %v851
        %v867 = vpack.c.bf16 %v858, %v856
        %v868 = vld [vmem:[%s6] sm:$0xf]
        %v869 = vld [vmem:[%s6 + $0x4] sm:$0xf]
        %v870 = vld [vmem:[%s6 + $0x8] sm:$0xf]
        %v871 = vld [vmem:[%s6 + $0xc] sm:$0xf]
        %v872 = vld [vmem:[%s6 + $0x10] sm:$0xf]
        %v873 = vld [vmem:[%s6 + $0x14] sm:$0xf]
        %v874 = vld [vmem:[%s6 + $0x18] sm:$0xf]
        %v875 = vld [vmem:[%s6 + $0x1c] sm:$0xf]
        %v876 = vld [vmem:[%s6 + $0x20] sm:$0xf]
        %v877 = vld [vmem:[%s6 + $0x24] sm:$0xf]
        %v878 = vld [vmem:[%s6 + $0x28] sm:$0xf]
        %v879 = vld [vmem:[%s6 + $0x2c] sm:$0xf]
        %v880 = vld [vmem:[%s6 + $0x30] sm:$0xf]
        %v881 = vld [vmem:[%s6 + $0x34] sm:$0xf]
        %v882 = vld [vmem:[%s6 + $0x38] sm:$0xf]
        %v883 = vld [vmem:[%s6 + $0x3c] sm:$0xf]
        %v884 = vld [vmem:[%s7] sm:$0x1]
        %v886 = vperm.slane %v884, 0
        %v904 = vunpack.c.l.b16 %v868
        %v905 = vunpack.c.l.b16 %v869
        %v906 = vunpack.c.l.b16 %v870
        %v907 = vunpack.c.l.b16 %v871
        %v908 = vunpack.c.l.b16 %v872
        %v909 = vunpack.c.l.b16 %v873
        %v910 = vunpack.c.l.b16 %v874
        %v911 = vunpack.c.l.b16 %v875
        %v912 = vunpack.c.l.b16 %v876
        %v913 = vunpack.c.l.b16 %v877
        %v914 = vunpack.c.l.b16 %v878
        %v915 = vunpack.c.l.b16 %v879
        %v916 = vunpack.c.l.b16 %v880
        %v917 = vunpack.c.l.b16 %v881
        %v918 = vunpack.c.l.b16 %v882
        %v919 = vunpack.c.l.b16 %v883
        %v920 = vpack.c.b16 %v905, %v904
        %v921 = vpack.c.b16 %v907, %v906
        %v922 = vpack.c.b16 %v909, %v908
        %v923 = vpack.c.b16 %v911, %v910
        %v924 = vpack.c.b16 %v913, %v912
        %v925 = vpack.c.b16 %v915, %v914
        %v926 = vpack.c.b16 %v917, %v916
        %v927 = vpack.c.b16 %v919, %v918
        %936 = vmatpush.bf16.msra.mxu0 %v927
        %937 = vmatpush.bf16.msra.mxu0 %v926
        %938 = vmatpush.bf16.msra.mxu0 %v925
        %939 = vmatpush.bf16.msra.mxu0 %v924
        %940 = vmatpush.bf16.msra.mxu0 %v923
        %941 = vmatpush.bf16.msra.mxu0 %v922
        %942 = vmatpush.bf16.msra.mxu0 %v921
        %943 = vmatpush.bf16.msra.mxu0 %v920
        %944 = vmatmul.bf16.gmra.mxu0 %v860
        %v945 = vpop.f32.mrf.mxu0
        %v946 = vadd.f32 %v886, %v945
        %v947 = vpop.f32.mrf.mxu0
        %v948 = vadd.f32 %v886, %v947
        %949 = vmatmul.bf16.gmra.mxu0 %v861
        %v950 = vpop.f32.mrf.mxu0
        %v951 = vadd.f32 %v886, %v950
        %v952 = vpop.f32.mrf.mxu0
        %v953 = vadd.f32 %v886, %v952
        %954 = vmatmul.bf16.gmra.mxu0 %v862
        %v955 = vpop.f32.mrf.mxu0
        %v956 = vadd.f32 %v886, %v955
        %v957 = vpop.f32.mrf.mxu0
        %v958 = vadd.f32 %v886, %v957
        %959 = vmatmul.bf16.gmra.mxu0 %v863
        %v960 = vpop.f32.mrf.mxu0
        %v961 = vadd.f32 %v886, %v960
        %v962 = vpop.f32.mrf.mxu0
        %v963 = vadd.f32 %v886, %v962
        %964 = vmatmul.bf16.gmra.mxu0 %v864
        %v965 = vpop.f32.mrf.mxu0
        %v966 = vadd.f32 %v886, %v965
        %v967 = vpop.f32.mrf.mxu0
        %v968 = vadd.f32 %v886, %v967
        %969 = vmatmul.bf16.gmra.mxu0 %v865
        %v970 = vpop.f32.mrf.mxu0
        %v971 = vadd.f32 %v886, %v970
        %v972 = vpop.f32.mrf.mxu0
        %v973 = vadd.f32 %v886, %v972
        %974 = vmatmul.bf16.gmra.mxu0 %v866
        %v975 = vpop.f32.mrf.mxu0
        %v976 = vadd.f32 %v886, %v975
        %v977 = vpop.f32.mrf.mxu0
        %v978 = vadd.f32 %v886, %v977
        %979 = vmatmul.bf16.gmra.mxu0 %v867
        %v980 = vpop.f32.mrf.mxu0
        %v981 = vadd.f32 %v886, %v980
        %v982 = vpop.f32.mrf.mxu0
        %v983 = vadd.f32 %v886, %v982
        %984 = vdwg.mxu0
        %v985 = vlaneseq
        %v986 = vand.u32 %v985, 127
        %vm987 = vcmp.lt.s32.totalorder %v986, 4
        %v988 = vsel %vm987, %v946, -1e+30
        %v989 = vsel %vm987, %v948, -1e+30
        %v990 = vsel %vm987, %v951, -1e+30
        %v991 = vsel %vm987, %v953, -1e+30
        %v992 = vsel %vm987, %v956, -1e+30
        %v993 = vsel %vm987, %v958, -1e+30
        %v994 = vsel %vm987, %v961, -1e+30
        %v995 = vsel %vm987, %v963, -1e+30
        %v996 = vsel %vm987, %v966, -1e+30
        %v997 = vsel %vm987, %v968, -1e+30
        %v998 = vsel %vm987, %v971, -1e+30
        %v999 = vsel %vm987, %v973, -1e+30
        %v1000 = vsel %vm987, %v976, -1e+30
        %v1001 = vsel %vm987, %v978, -1e+30
        %v1002 = vsel %vm987, %v981, -1e+30
        %v1003 = vsel %vm987, %v983, -1e+30
        %1004 = vmax.xlane.f32.xlu0 %v988
        %v1005 = vpop.xlane.xlu0 %1004
        %1006 = vmax.xlane.f32.xlu0 %v989
        %v1007 = vpop.xlane.xlu0 %1006
        %1008 = vmax.xlane.f32.xlu0 %v990
        %v1009 = vpop.xlane.xlu0 %1008
        %1010 = vmax.xlane.f32.xlu0 %v991
        %v1011 = vpop.xlane.xlu0 %1010
        %1012 = vmax.xlane.f32.xlu0 %v992
        %v1013 = vpop.xlane.xlu0 %1012
        %1014 = vmax.xlane.f32.xlu0 %v993
        %v1015 = vpop.xlane.xlu0 %1014
        %1016 = vmax.xlane.f32.xlu0 %v994
        %v1017 = vpop.xlane.xlu0 %1016
        %1018 = vmax.xlane.f32.xlu0 %v995
        %v1019 = vpop.xlane.xlu0 %1018
        %1020 = vmax.xlane.f32.xlu0 %v996
        %v1021 = vpop.xlane.xlu0 %1020
        %1022 = vmax.xlane.f32.xlu0 %v997
        %v1023 = vpop.xlane.xlu0 %1022
        %1024 = vmax.xlane.f32.xlu0 %v998
        %v1025 = vpop.xlane.xlu0 %1024
        %1026 = vmax.xlane.f32.xlu0 %v999
        %v1027 = vpop.xlane.xlu0 %1026
        %1028 = vmax.xlane.f32.xlu0 %v1000
        %v1029 = vpop.xlane.xlu0 %1028
        %1030 = vmax.xlane.f32.xlu0 %v1001
        %v1031 = vpop.xlane.xlu0 %1030
        %1032 = vmax.xlane.f32.xlu0 %v1002
        %v1033 = vpop.xlane.xlu0 %1032
        %1034 = vmax.xlane.f32.xlu0 %v1003
        %v1035 = vpop.xlane.xlu0 %1034
        %v1036 = vsub.f32 %v988, %v1005
        %v1037 = vsub.f32 %v989, %v1007
        %v1038 = vsub.f32 %v990, %v1009
        %v1039 = vsub.f32 %v991, %v1011
        %v1040 = vsub.f32 %v992, %v1013
        %v1041 = vsub.f32 %v993, %v1015
        %v1042 = vsub.f32 %v994, %v1017
        %v1043 = vsub.f32 %v995, %v1019
        %v1044 = vsub.f32 %v996, %v1021
        %v1045 = vsub.f32 %v997, %v1023
        %v1046 = vsub.f32 %v998, %v1025
        %v1047 = vsub.f32 %v999, %v1027
        %v1048 = vsub.f32 %v1000, %v1029
        %v1049 = vsub.f32 %v1001, %v1031
        %v1050 = vsub.f32 %v1002, %v1033
        %v1051 = vsub.f32 %v1003, %v1035
        %v1052 = vmul.f32 %v1036, 1.442695
        %v1053 = vpow.pop %v1052
        %v1054 = vmul.f32 %v1037, 1.442695
        %v1055 = vpow.pop %v1054
        %v1056 = vmul.f32 %v1038, 1.442695
        %v1057 = vpow.pop %v1056
        %v1058 = vmul.f32 %v1039, 1.442695
        %v1059 = vpow.pop %v1058
        %v1060 = vmul.f32 %v1040, 1.442695
        %v1061 = vpow.pop %v1060
        %v1062 = vmul.f32 %v1041, 1.442695
        %v1063 = vpow.pop %v1062
        %v1064 = vmul.f32 %v1042, 1.442695
        %v1065 = vpow.pop %v1064
        %v1066 = vmul.f32 %v1043, 1.442695
        %v1067 = vpow.pop %v1066
        %v1068 = vmul.f32 %v1044, 1.442695
        %v1069 = vpow.pop %v1068
        %v1070 = vmul.f32 %v1045, 1.442695
        %v1071 = vpow.pop %v1070
        %v1072 = vmul.f32 %v1046, 1.442695
        %v1073 = vpow.pop %v1072
        %v1074 = vmul.f32 %v1047, 1.442695
        %v1075 = vpow.pop %v1074
        %v1076 = vmul.f32 %v1048, 1.442695
        %v1077 = vpow.pop %v1076
        %v1078 = vmul.f32 %v1049, 1.442695
        %v1079 = vpow.pop %v1078
        %v1080 = vmul.f32 %v1050, 1.442695
        %v1081 = vpow.pop %v1080
        %v1082 = vmul.f32 %v1051, 1.442695
        %v1083 = vpow.pop %v1082
        %1084 = vadd.xlane.f32.xlu0 %v1053
        %v1085 = vpop.xlane.xlu0 %1084
        %1086 = vadd.xlane.f32.xlu0 %v1055
        %v1087 = vpop.xlane.xlu0 %1086
        %1088 = vadd.xlane.f32.xlu0 %v1057
        %v1089 = vpop.xlane.xlu0 %1088
        %1090 = vadd.xlane.f32.xlu0 %v1059
        %v1091 = vpop.xlane.xlu0 %1090
        %1092 = vadd.xlane.f32.xlu0 %v1061
        %v1093 = vpop.xlane.xlu0 %1092
        %1094 = vadd.xlane.f32.xlu0 %v1063
        %v1095 = vpop.xlane.xlu0 %1094
        %1096 = vadd.xlane.f32.xlu0 %v1065
        %v1097 = vpop.xlane.xlu0 %1096
        %1098 = vadd.xlane.f32.xlu0 %v1067
        %v1099 = vpop.xlane.xlu0 %1098
        %1100 = vadd.xlane.f32.xlu0 %v1069
        %v1101 = vpop.xlane.xlu0 %1100
        %1102 = vadd.xlane.f32.xlu0 %v1071
        %v1103 = vpop.xlane.xlu0 %1102
        %1104 = vadd.xlane.f32.xlu0 %v1073
        %v1105 = vpop.xlane.xlu0 %1104
        %1106 = vadd.xlane.f32.xlu0 %v1075
        %v1107 = vpop.xlane.xlu0 %1106
        %1108 = vadd.xlane.f32.xlu0 %v1077
        %v1109 = vpop.xlane.xlu0 %1108
        %1110 = vadd.xlane.f32.xlu0 %v1079
        %v1111 = vpop.xlane.xlu0 %1110
        %1112 = vadd.xlane.f32.xlu0 %v1081
        %v1113 = vpop.xlane.xlu0 %1112
        %1114 = vadd.xlane.f32.xlu0 %v1083
        %v1115 = vpop.xlane.xlu0 %1114
        %v1116 = vlog2.pop %v1085
        %v1117 = vmul.f32 %v1116, 0.6931472
        %v1118 = vlog2.pop %v1087
        %v1119 = vmul.f32 %v1118, 0.6931472
        %v1120 = vlog2.pop %v1089
        %v1121 = vmul.f32 %v1120, 0.6931472
        %v1122 = vlog2.pop %v1091
        %v1123 = vmul.f32 %v1122, 0.6931472
        %v1124 = vlog2.pop %v1093
        %v1125 = vmul.f32 %v1124, 0.6931472
        %v1126 = vlog2.pop %v1095
        %v1127 = vmul.f32 %v1126, 0.6931472
        %v1128 = vlog2.pop %v1097
        %v1129 = vmul.f32 %v1128, 0.6931472
        %v1130 = vlog2.pop %v1099
        %v1131 = vmul.f32 %v1130, 0.6931472
        %v1132 = vlog2.pop %v1101
        %v1133 = vmul.f32 %v1132, 0.6931472
        %v1134 = vlog2.pop %v1103
        %v1135 = vmul.f32 %v1134, 0.6931472
        %v1136 = vlog2.pop %v1105
        %v1137 = vmul.f32 %v1136, 0.6931472
        %v1138 = vlog2.pop %v1107
        %v1139 = vmul.f32 %v1138, 0.6931472
        %v1140 = vlog2.pop %v1109
        %v1141 = vmul.f32 %v1140, 0.6931472
        %v1142 = vlog2.pop %v1111
        %v1143 = vmul.f32 %v1142, 0.6931472
        %v1144 = vlog2.pop %v1113
        %v1145 = vmul.f32 %v1144, 0.6931472
        %v1146 = vlog2.pop %v1115
        %v1147 = vmul.f32 %v1146, 0.6931472
        %v1148 = vadd.f32 %v1117, %v1005
        %v1149 = vadd.f32 %v1119, %v1007
        %v1150 = vadd.f32 %v1121, %v1009
        %v1151 = vadd.f32 %v1123, %v1011
        %v1152 = vadd.f32 %v1125, %v1013
        %v1153 = vadd.f32 %v1127, %v1015
        %v1154 = vadd.f32 %v1129, %v1017
        %v1155 = vadd.f32 %v1131, %v1019
        %v1156 = vadd.f32 %v1133, %v1021
        %v1157 = vadd.f32 %v1135, %v1023
        %v1158 = vadd.f32 %v1137, %v1025
        %v1159 = vadd.f32 %v1139, %v1027
        %v1160 = vadd.f32 %v1141, %v1029
        %v1161 = vadd.f32 %v1143, %v1031
        %v1162 = vadd.f32 %v1145, %v1033
        %v1163 = vadd.f32 %v1147, %v1035
        %v1164 = vsub.f32 %v988, %v1148
        %v1165 = vsub.f32 %v989, %v1149
        %v1166 = vsub.f32 %v990, %v1150
        %v1167 = vsub.f32 %v991, %v1151
        %v1168 = vsub.f32 %v992, %v1152
        %v1169 = vsub.f32 %v993, %v1153
        %v1170 = vsub.f32 %v994, %v1154
        %v1171 = vsub.f32 %v995, %v1155
        %v1172 = vsub.f32 %v996, %v1156
        %v1173 = vsub.f32 %v997, %v1157
        %v1174 = vsub.f32 %v998, %v1158
        %v1175 = vsub.f32 %v999, %v1159
        %v1176 = vsub.f32 %v1000, %v1160
        %v1177 = vsub.f32 %v1001, %v1161
        %v1178 = vsub.f32 %v1002, %v1162
        %v1179 = vsub.f32 %v1003, %v1163
        %1180 = vst [vmem:[%s8] sm:$0xff] %v1164
        %1181 = vst [vmem:[%s8 + $0x8] sm:$0xff] %v1165
        %1182 = vst [vmem:[%s8 + $0x10] sm:$0xff] %v1166
        %1183 = vst [vmem:[%s8 + $0x18] sm:$0xff] %v1167
        %1184 = vst [vmem:[%s8 + $0x20] sm:$0xff] %v1168
        %1185 = vst [vmem:[%s8 + $0x28] sm:$0xff] %v1169
        %1186 = vst [vmem:[%s8 + $0x30] sm:$0xff] %v1170
        %1187 = vst [vmem:[%s8 + $0x38] sm:$0xff] %v1171
        %1188 = vst [vmem:[%s8 + $0x40] sm:$0xff] %v1172
        %1189 = vst [vmem:[%s8 + $0x48] sm:$0xff] %v1173
        %1190 = vst [vmem:[%s8 + $0x50] sm:$0xff] %v1174
        %1191 = vst [vmem:[%s8 + $0x58] sm:$0xff] %v1175
        %1192 = vst [vmem:[%s8 + $0x60] sm:$0xff] %v1176
        %1193 = vst [vmem:[%s8 + $0x68] sm:$0xff] %v1177
        %1194 = vst [vmem:[%s8 + $0x70] sm:$0xff] %v1178
        %1195 = vst [vmem:[%s8 + $0x78] sm:$0xff] %v1179
      $region60: #{sparse_cin_forward.1} parent=51 // pred_fallthru
        _
      // Predicated region
      $region61: #{sparse_cin_forward.1} parent=51 // pred_check
        %p1196 = pneg %p210
      $region62: #{sparse_cin_forward.1} parent=51 // pred_check_branch
        %1198 = sbr.rel (%p1196) target = $region64
      $region63: #{sparse_cin_forward.1} parent=51 // pred_region
        _
      $region64: #{sparse_cin_forward.1} parent=51 // pred_fallthru
        _
      // Predicated region
      $region65: #{sparse_cin_forward.1} parent=51 // pred_check
        %p1199 = pneg %p210
      $region66: #{sparse_cin_forward.1} parent=51 // pred_check_branch
        %1201 = sbr.rel (%p1199) target = $region68
      $region67: #{sparse_cin_forward.1} parent=51 // pred_region
        _
      $region68: #{sparse_cin_forward.1} parent=51 // pred_fallthru
        _
    $region52: #{sparse_cin_forward.1} parent=5 // pred_fallthru
      _
    %p1202 = scmp.le.s32.totalorder 2, %s14
    // Predicated region
    $region69: #{sparse_cin_forward.1} parent=5 // pred_check
      %p1203 = pneg %p1202
    $region70: #{sparse_cin_forward.1} parent=5 // pred_check_branch
      %1205 = sbr.rel (%p1203) target = $region72
    $region71: #{sparse_cin_forward.1} parent=5 // pred_region
      %s1206 = ssub.s32 %s14, 2
    $region72: #{sparse_cin_forward.1} parent=5 // pred_fallthru
      _
  $region6: #{sparse_cin_forward.1} parent=0 // loop_footer
    %s18 = sadd.s32 1, %s14
  $region7: #{sparse_cin_forward.1} parent=0 // loop_footer_branch
    %13 = sbr.rel target = $region3
  $region8: #{sparse_cin_forward.1} parent=0 // loop_exit
    _

</llo_original>
